<compile_context>
chip_gen: v7x
topology: tpu7x:2x2x1
jax: 0.10.0
libtpu: 0.0.40
codegen_flags: <defaults>
</compile_context>

<pallas_src>
import jax
import jax.numpy as jnp
from jax.experimental import pallas as pl
from jax.experimental.pallas import tpu as pltpu

_LANE = 128                      # TPU lane width (last-dim alignment)
_FT_CAP = 1024                   # max frames per tile (multiple of 128)
_TILE_BYTES_CAP = 4 * 1024 * 1024  # ~4 MiB per mel/out tile (v7x-safe)


def _round_up(x, m):
    return ((x + m - 1) // m) * m


def _largest_divisor_leq(n, cap):
    cap = max(1, min(n, cap))
    for d in range(cap, 0, -1):
        if n % d == 0:
            return d
    return 1


def _prompter_add_kernel(mel_ref, delta_ref, out_ref):
    # mel_ref/out_ref: (bt, mel_bins, ft) tiles; delta_ref: (1, mel_bins, ft).
    # Broadcast over the batch rows of the tile happens in the VPU add.
    out_ref[...] = (
        mel_ref[...].astype(out_ref.dtype) + delta_ref[...].astype(out_ref.dtype)
    )


def audio_prompter_forward(mel, delta):
    """mel: (B, mel_bins, frames), delta: (1, mel_bins, max_frames).

    Returns mel + delta[:, :, :frames] broadcast over batch (AudioPrompter.forward).
    """
    B, mel_bins, frames = mel.shape
    max_frames = delta.shape[2]
    if frames > max_frames:
        raise ValueError(
            f"[AudioPrompter] input frames={frames} exceeds max supported "
            f"length {max_frames}."
        )

    out_dtype = jnp.result_type(mel.dtype, delta.dtype)
    itemsize = jnp.dtype(out_dtype).itemsize

    # ---- wrapper glue: crop delta, pad frames to a lane-dense multiple of 128
    padded_frames = _round_up(frames, _LANE)
    delta_c = delta[:, :, :frames]
    if padded_frames != frames:
        pad = padded_frames - frames
        mel_p = jnp.pad(mel, ((0, 0), (0, 0), (0, pad)))
        delta_p = jnp.pad(delta_c, ((0, 0), (0, 0), (0, pad)))
    else:
        mel_p = mel
        delta_p = delta_c

    # ---- tiling: big frame chunks, several batch rows per tile
    n128 = padded_frames // _LANE
    frame_tile = _largest_divisor_leq(n128, _FT_CAP // _LANE) * _LANE
    per_row_bytes = mel_bins * frame_tile * itemsize
    bt_cap = max(1, _TILE_BYTES_CAP // per_row_bytes)
    bt = _largest_divisor_leq(B, bt_cap)

    grid_f = padded_frames // frame_tile
    grid_b = B // bt
    # v7x: keep at least 2 grid steps so both TensorCores get work
    # (negligible extra per-step overhead on v5e/v6e since tiles stay large).
    if grid_f * grid_b == 1 and B >= 2:
        bt = _largest_divisor_leq(B, B // 2)
        grid_b = B // bt

    # grid = (frame chunks, batch chunks); batch is the innermost axis so the
    # delta block index is unchanged between consecutive steps (no re-DMA).
    grid = (grid_f, grid_b)

    out = pl.pallas_call(
        _prompter_add_kernel,
        out_shape=jax.ShapeDtypeStruct((B, mel_bins, padded_frames), out_dtype),
        grid_spec=pl.GridSpec(
            grid=grid,
            in_specs=[
                pl.BlockSpec((bt, mel_bins, frame_tile), lambda fj, bi: (bi, 0, fj)),
                pl.BlockSpec((1, mel_bins, frame_tile), lambda fj, bi: (0, 0, fj)),
            ],
            out_specs=pl.BlockSpec(
                (bt, mel_bins, frame_tile), lambda fj, bi: (bi, 0, fj)
            ),
        ),
        compiler_params=pltpu.CompilerParams(
            dimension_semantics=("parallel", "parallel"),
        ),
    )(mel_p, delta_p)

    if padded_frames != frames:
        out = out[:, :, :frames]
    return out


if __name__ == "__main__":
    key = jax.random.PRNGKey(0)
    k_mel, k_delta, k_mel2 = jax.random.split(key, 3)

    # Case 1: lane-aligned frames (batch=2, mel_bins=80, frames=128, max=256).
    B, MEL_BINS, FRAMES, MAX_FRAMES = 2, 80, 128, 256
    mel = jax.random.normal(k_mel, (B, MEL_BINS, FRAMES), dtype=jnp.float32)
    # PyTorch init is zeros; use a small deterministic delta so the add is
    # nontrivial (synthetic kernel, no checkpoint load).
    delta = 0.01 * jax.random.normal(
        k_delta, (1, MEL_BINS, MAX_FRAMES), dtype=jnp.float32
    )

    out = jax.block_until_ready(audio_prompter_forward(mel, delta))
    ref = mel + delta[:, :, :FRAMES]
    assert out.shape == (B, MEL_BINS, FRAMES)
    assert out.dtype == mel.dtype
    assert jnp.allclose(out, ref, atol=1e-6, rtol=1e-6)

    # Case 2: ragged frames + odd batch (exercises the padding / crop path).
    B2, FRAMES2 = 3, 96
    mel2 = jax.random.normal(k_mel2, (B2, MEL_BINS, FRAMES2), dtype=jnp.float32)
    out2 = jax.block_until_ready(audio_prompter_forward(mel2, delta))
    ref2 = mel2 + delta[:, :, :FRAMES2]
    assert out2.shape == (B2, MEL_BINS, FRAMES2)
    assert jnp.allclose(out2, ref2, atol=1e-6, rtol=1e-6)

    print("KERNEL_OK")
</pallas_src>

<mosaic_0001>
module attributes {stable_mosaic.version = 11 : i64} {
  func.func @_prompter_add_kernel(%arg0: i32, %arg1: i32, %arg2: memref<1x80x128xf32, #tpu.memory_space<vmem>>, %arg3: memref<1x80x128xf32, #tpu.memory_space<vmem>>, %arg4: memref<1x80x128xf32, #tpu.memory_space<vmem>>) attributes {dimension_semantics = [#tpu.dimension_semantics<parallel>, #tpu.dimension_semantics<parallel>], iteration_bounds = array<i64: 1, 2>, scalar_prefetch = 0 : i64, scratch_operands = 0 : i64, tpu.core_type = #tpu.core_type<tc>, window_params = [{transform_indices = @transform_0, window_bounds = array<i64: 1, 80, 128>}, {transform_indices = @transform_1, window_bounds = array<i64: 1, 80, 128>}, {transform_indices = @transform_2, window_bounds = array<i64: 1, 80, 128>}]} {
    %c0 = arith.constant 0 : index
    %c0_0 = arith.constant 0 : index
    %c0_1 = arith.constant 0 : index
    %0 = vector.load %arg2[%c0, %c0_0, %c0_1] : memref<1x80x128xf32, #tpu.memory_space<vmem>>, vector<1x80x128xf32>
    %c0_2 = arith.constant 0 : index
    %c0_3 = arith.constant 0 : index
    %c0_4 = arith.constant 0 : index
    %1 = vector.load %arg3[%c0_2, %c0_3, %c0_4] : memref<1x80x128xf32, #tpu.memory_space<vmem>>, vector<1x80x128xf32>
    %2 = arith.addf %0, %1 : vector<1x80x128xf32>
    %c0_5 = arith.constant 0 : index
    %c0_6 = arith.constant 0 : index
    %c0_7 = arith.constant 0 : index
    %3 = vector.load %arg4[%c0_5, %c0_6, %c0_7] : memref<1x80x128xf32, #tpu.memory_space<vmem>>, vector<1x80x128xf32>
    tpu.vector_store %arg4[%c0_5, %c0_6, %c0_7], %2 {strides = array<i32>} : memref<1x80x128xf32, #tpu.memory_space<vmem>>, vector<1x80x128xf32>,
    return
  }
  func.func @transform_0(%arg0: i32, %arg1: i32) -> (i32, i32, i32) {
    %c0_i32 = arith.constant 0 : i32
    %c0_i32_0 = arith.constant 0 : i32
    return %arg1, %c0_i32, %arg0 : i32, i32, i32
  }
  func.func @transform_1(%arg0: i32, %arg1: i32) -> (i32, i32, i32) {
    %c0_i32 = arith.constant 0 : i32
    %c0_i32_0 = arith.constant 0 : i32
    %c0_i32_1 = arith.constant 0 : i32
    return %c0_i32, %c0_i32_0, %arg0 : i32, i32, i32
  }
  func.func @transform_2(%arg0: i32, %arg1: i32) -> (i32, i32, i32) {
    %c0_i32 = arith.constant 0 : i32
    %c0_i32_0 = arith.constant 0 : i32
    return %arg1, %c0_i32, %arg0 : i32, i32, i32
  }
}

</mosaic_0001>

<llo_original>
// kernel: tpu_custom_call.1
$region0: #{tpu_custom_call.1}
  #allocation0 [shape = 'u32[]', space=smem, size = 0x4, offset = 0x4, fixed_abs, tag = 'smem constant byte address 0x4 - core index']
  #allocation1 [shape = 'u32[144,128]{1,0:T(1,128)}', space=vmem, size = 0x12000, scoped, tag = 'internal scratch']
  %s0 = inlined_call_operand.hbm [shape: f32[2,80,128], index: 0, kind: input, shape index: {}]
  %s1 = inlined_call_operand.hbm [shape: f32[1,80,128], index: 1, kind: input, shape index: {}]
  %s2 = inlined_call_operand.hbm [shape: f32[2,80,128], index: 2, kind: output, shape index: {}]
  %s3 = sld [smem:[#allocation0]]
  $region49: #{tpu_custom_call.1} parent=0
    _
  %s5 = ssub.s32 1, %s3
  %s6 = scalar_select 0, %s5, %s3
  $region1: #{tpu_custom_call.1} parent=0
    #allocation2 [shape = 'u8[81920]{0}', space=vmem, size = 0x14000, scoped, tag = 'input window, operand 0']
    #allocation3 [shape = 's32[2]{0}', space=sflag, size = 0x8, scoped, tag = 'scoped memory for tpu_custom_call.1']
    #allocation4 [shape = 's32[2]{0}', space=sflag, size = 0x8, scoped, tag = 'scoped memory for tpu_custom_call.1']
    #allocation5 [shape = 'u8[40960]{0}', space=vmem, size = 0xa000, scoped, tag = 'input window, operand 1, single buffered']
    #allocation6 [shape = 's32[1]{0}', space=sflag, size = 0x4, scoped, tag = 'scoped memory for tpu_custom_call.1']
    #allocation7 [shape = 'u8[81920]{0}', space=vmem, size = 0x14000, scoped, tag = 'output window, operand 0']
    %7 = vsyncpa [#allocation3], 0
    %s8 = scalar_lea.sflag [#allocation3], 1
    %9 = vsyncpa %s8, 0
    %10 = vsyncpa [#allocation6], 0
    %11 = vsyncpa [#allocation4], 0
    %s12 = scalar_lea.sflag [#allocation4], 1
    %13 = vsyncpa %s12, 0
    loop: start=0, step=1, limit=4
    $region2: #{tpu_custom_call.1} parent=1 // loop_pre_header
      _
    $region3: #{tpu_custom_call.1} parent=1 // loop_header
      %s15 = sphi 0, %s19
      %p16 = scmp.ge.s32.totalorder %s15, 4
      %s22 = sphi 0, %s34
      %s23 = sphi 0, %s30
      %s24 = sphi 0, %s22
      %s25 = sphi 0, %s23
      %s26 = sphi 0, %s24
      %s27 = sphi 0, %s25
      %s39 = sphi 0, %s41
      %s42 = sphi 0, %s39
      %s43 = sphi 0, %s42
      %s59 = sphi 0, %s43
      %s65 = sphi 0, %s67
      %s68 = sphi 0, %s65
      %s69 = sphi 0, %s68
      %s85 = sphi 0, %s69
      %s93 = sphi 0, %s95
      %s96 = sphi 0, %s93
      %s97 = sphi 0, %s96
      %s113 = sphi 0, %s97
    $region4: #{tpu_custom_call.1} parent=1 // loop_header_branch
      %18 = sbr.rel (%p16) target = $region8
    $region5: #{tpu_custom_call.1} parent=1 // loop_body
      %s20 = ssub.s32 %s15, 1
      %s21 = ssub.s32 %s15, 2
      %s28 = sadd.s32 1, %s23
      %p29 = scmp.ge.s32.totalorder %s28, 2
      %s30 = scalar_select %p29, 0, %s28
      %s31 = sadd.s32 1, %s22
      %s32 = scalar_select %p29, %s31, %s22
      %p33 = scmp.ge.s32.totalorder %s32, 1
      %s34 = scalar_select %p33, 0, %s32
      %s35 = ssub.s32 %s23, %s30
      %s36 = ssub.s32 %s22, %s34
      %s37 = sor.u32 %s35, %s36
      %p38 = scmp.eq.s32.totalorder %s37, 0
      %s40 = sadd.s32 %s39, 1
      %s41 = scalar_select %p38, %s39, %s40
      %p44 = pneg %p38
      %p45 = scmp.eq.s32.totalorder %s15, 1
      %p46 = por %p44, %p45
      %p47 = scmp.ne.s32.totalorder %s39, %s42
      %p48 = scmp.eq.s32.totalorder %s15, 0
      %p49 = por %p47, %p48
      %p50 = scmp.ne.s32.totalorder %s39, %s42
      %p51 = scmp.eq.s32.totalorder %s20, 1
      %p52 = por %p50, %p51
      %p53 = scmp.ne.s32.totalorder %s42, %s43
      %p54 = scmp.eq.s32.totalorder %s20, 0
      %p55 = por %p53, %p54
      %p56 = scmp.ne.s32.totalorder %s42, %s43
      %p57 = scmp.eq.s32.totalorder %s21, 1
      %p58 = por %p56, %p57
      %p60 = scmp.ne.s32.totalorder %s43, %s59
      %p61 = scmp.eq.s32.totalorder %s21, 0
      %p62 = por %p60, %p61
      %s63 = ssub.s32 %s22, %s34
      %p64 = scmp.eq.s32.totalorder %s63, 0
      %s66 = sadd.s32 %s65, 1
      %s67 = scalar_select %p64, %s65, %s66
      %p70 = pneg %p64
      %p71 = scmp.eq.s32.totalorder %s15, 1
      %p72 = por %p70, %p71
      %p73 = scmp.ne.s32.totalorder %s65, %s68
      %p74 = scmp.eq.s32.totalorder %s15, 0
      %p75 = por %p73, %p74
      %p76 = scmp.ne.s32.totalorder %s65, %s68
      %p77 = scmp.eq.s32.totalorder %s20, 1
      %p78 = por %p76, %p77
      %p79 = scmp.ne.s32.totalorder %s68, %s69
      %p80 = scmp.eq.s32.totalorder %s20, 0
      %p81 = por %p79, %p80
      %p82 = scmp.ne.s32.totalorder %s68, %s69
      %p83 = scmp.eq.s32.totalorder %s21, 1
      %p84 = por %p82, %p83
      %p86 = scmp.ne.s32.totalorder %s69, %s85
      %p87 = scmp.eq.s32.totalorder %s21, 0
      %p88 = por %p86, %p87
      %s89 = ssub.s32 %s23, %s30
      %s90 = ssub.s32 %s22, %s34
      %s91 = sor.u32 %s89, %s90
      %p92 = scmp.eq.s32.totalorder %s91, 0
      %s94 = sadd.s32 %s93, 1
      %s95 = scalar_select %p92, %s93, %s94
      %p98 = pneg %p92
      %p99 = scmp.eq.s32.totalorder %s15, 1
      %p100 = por %p98, %p99
      %p101 = scmp.ne.s32.totalorder %s93, %s96
      %p102 = scmp.eq.s32.totalorder %s15, 0
      %p103 = por %p101, %p102
      %p104 = scmp.ne.s32.totalorder %s93, %s96
      %p105 = scmp.eq.s32.totalorder %s20, 1
      %p106 = por %p104, %p105
      %p107 = scmp.ne.s32.totalorder %s96, %s97
      %p108 = scmp.eq.s32.totalorder %s20, 0
      %p109 = por %p107, %p108
      %p110 = scmp.ne.s32.totalorder %s96, %s97
      %p111 = scmp.eq.s32.totalorder %s21, 1
      %p112 = por %p110, %p111
      %p114 = scmp.ne.s32.totalorder %s97, %s113
      %p115 = scmp.eq.s32.totalorder %s21, 0
      %p116 = por %p114, %p115
      %p117 = scmp.le.s32.totalorder 1, %s15
      %p118 = scmp.lt.s32.totalorder %s15, 3
      %p119 = pnand %p117, %p118
      %p120 = pneg %p119
      // Predicated region
      $region9: #{tpu_custom_call.1} parent=5 // pred_check
        _
      $region10: #{tpu_custom_call.1} parent=5 // pred_check_branch
        %122 = sbr.rel (%p119) target = $region12
      $region11: #{tpu_custom_call.1} parent=5 // pred_region
        %s123 = ssub.s32 %s15, 1
        // Predicated region
        $region13: #{tpu_custom_call.1} parent=11 // pred_check
          %p124 = pneg %p81
        $region14: #{tpu_custom_call.1} parent=11 // pred_check_branch
          %126 = sbr.rel (%p124) target = $region16
        $region15: #{tpu_custom_call.1} parent=11 // pred_region
          %s128 = ssub.s32 1280, 1280
          %129 = vsyncadd [#allocation6], %s128
          %s130 = smul.addr %s24, 128
          %s131 = scalar_lea.hbm %s1, %s130
          %s132 = sshll.u32 [#allocation5], 4
          %s133 = int_to_ptr.vmem [resolvable:$true] %s132
          %138 = dma.hbm_to_vmem [thread:$0]  %s131, 1280, %s133, [#allocation6], 128, 128, 8
        $region16: #{tpu_custom_call.1} parent=11 // pred_fallthru
          _
      $region12: #{tpu_custom_call.1} parent=5 // pred_fallthru
        _
      %p139 = scmp.lt.s32.totalorder %s15, 2
      // Predicated region
      $region17: #{tpu_custom_call.1} parent=5 // pred_check
        %p140 = pneg %p139
      $region18: #{tpu_custom_call.1} parent=5 // pred_check_branch
        %142 = sbr.rel (%p140) target = $region20
      $region19: #{tpu_custom_call.1} parent=5 // pred_region
        // Predicated region
        $region21: #{tpu_custom_call.1} parent=19 // pred_check
          %p143 = pneg %p49
        $region22: #{tpu_custom_call.1} parent=19 // pred_check_branch
          %145 = sbr.rel (%p143) target = $region24
        $region23: #{tpu_custom_call.1} parent=19 // pred_region
          %s146 = sand.u32 %s39, 1
          %s147 = scalar_lea.sflag [#allocation3], %s146
          %s148 = sand.u32 %s39, 1
          %s149 = smul.addr %s148, 80
          %s150 = scalar_lea.vmem [#allocation2], %s149
          %s152 = ssub.s32 1280, 1280
          %153 = vsyncadd %s147, %s152
          %s154 = smul.addr %s23, 10
          %s155 = sadd.s32 %s22, %s154
          %s156 = smul.addr %s155, 128
          %s157 = scalar_lea.hbm %s0, %s156
          %s158 = sshll.u32 %s150, 4
          %s159 = int_to_ptr.vmem [resolvable:$true] %s158
          %164 = dma.hbm_to_vmem [thread:$0]  %s157, 1280, %s159, %s147, 128, 128, 8
        $region24: #{tpu_custom_call.1} parent=19 // pred_fallthru
          _
      $region20: #{tpu_custom_call.1} parent=5 // pred_fallthru
        _
      %p165 = scmp.le.s32.totalorder 1, %s15
      %p166 = scmp.lt.s32.totalorder %s15, 3
      %p167 = pnand %p165, %p166
      %p168 = pneg %p167
      // Predicated region
      $region25: #{tpu_custom_call.1} parent=5 // pred_check
        _
      $region26: #{tpu_custom_call.1} parent=5 // pred_check_branch
        %170 = sbr.rel (%p167) target = $region28
      $region27: #{tpu_custom_call.1} parent=5 // pred_region
        %s171 = ssub.s32 %s15, 1
        %s172 = sand.u32 %s42, 1
        %s173 = scalar_lea.sflag [#allocation3], %s172
        %s174 = sand.u32 %s42, 1
        %s175 = smul.addr %s174, 80
        %s176 = scalar_lea.vmem [#allocation2], %s175
        // Predicated region
        $region29: #{tpu_custom_call.1} parent=27 // pred_check
          %p177 = pneg %p55
        $region30: #{tpu_custom_call.1} parent=27 // pred_check_branch
          %179 = sbr.rel (%p177) target = $region32
        $region31: #{tpu_custom_call.1} parent=27 // pred_region
          %180 = dma.done %s173, 1280
        $region32: #{tpu_custom_call.1} parent=27 // pred_fallthru
          _
        // Predicated region
        $region33: #{tpu_custom_call.1} parent=27 // pred_check
          %p181 = pneg %p81
        $region34: #{tpu_custom_call.1} parent=27 // pred_check_branch
          %183 = sbr.rel (%p181) target = $region36
        $region35: #{tpu_custom_call.1} parent=27 // pred_region
          %184 = dma.done [#allocation6], 1280
        $region36: #{tpu_custom_call.1} parent=27 // pred_fallthru
          _
        %s185 = sand.u32 %s42, 1
        %s186 = scalar_lea.sflag [#allocation3], %s185
        %s187 = sand.u32 %s42, 1
        %s188 = smul.addr %s187, 80
        %s189 = scalar_lea.vmem [#allocation2], %s188
        %p190 = pneg %p55
        %p191 = pneg %p52
        %p192 = pneg %p81
        %p193 = pneg %p78
        %p194 = pneg %p109
        %p195 = pneg %p106
        %s196 = sand.u32 %s96, 1
        %s197 = scalar_lea.sflag [#allocation4], %s196
        %s198 = sand.u32 %s96, 1
        %s199 = smul.addr %s198, 80
        %s200 = scalar_lea.vmem [#allocation7], %s199
        %v201 = vld [vmem:[%s176] sm:$0xff]
        %v202 = vld [vmem:[%s176 + $0x8] sm:$0xff]
        %v203 = vld [vmem:[%s176 + $0x10] sm:$0xff]
        %v204 = vld [vmem:[%s176 + $0x18] sm:$0xff]
        %v205 = vld [vmem:[%s176 + $0x20] sm:$0xff]
        %v206 = vld [vmem:[%s176 + $0x28] sm:$0xff]
        %v207 = vld [vmem:[%s176 + $0x30] sm:$0xff]
        %v208 = vld [vmem:[%s176 + $0x38] sm:$0xff]
        %v209 = vld [vmem:[%s176 + $0x40] sm:$0xff]
        %v210 = vld [vmem:[%s176 + $0x48] sm:$0xff]
        %v211 = vld [vmem:[#allocation5] sm:$0xff]
        %v212 = vld [vmem:[#allocation5 + $0x8] sm:$0xff]
        %v213 = vld [vmem:[#allocation5 + $0x10] sm:$0xff]
        %v214 = vld [vmem:[#allocation5 + $0x18] sm:$0xff]
        %v215 = vld [vmem:[#allocation5 + $0x20] sm:$0xff]
        %v216 = vld [vmem:[#allocation5 + $0x28] sm:$0xff]
        %v217 = vld [vmem:[#allocation5 + $0x30] sm:$0xff]
        %v218 = vld [vmem:[#allocation5 + $0x38] sm:$0xff]
        %v219 = vld [vmem:[#allocation5 + $0x40] sm:$0xff]
        %v220 = vld [vmem:[#allocation5 + $0x48] sm:$0xff]
        %v221 = vadd.f32 %v201, %v211
        %v222 = vadd.f32 %v202, %v212
        %v223 = vadd.f32 %v203, %v213
        %v224 = vadd.f32 %v204, %v214
        %v225 = vadd.f32 %v205, %v215
        %v226 = vadd.f32 %v206, %v216
        %v227 = vadd.f32 %v207, %v217
        %v228 = vadd.f32 %v208, %v218
        %v229 = vadd.f32 %v209, %v219
        %v230 = vadd.f32 %v210, %v220
        %231 = vst [vmem:[%s200] sm:$0xff] %v221
        %232 = vst [vmem:[%s200 + $0x8] sm:$0xff] %v222
        %233 = vst [vmem:[%s200 + $0x10] sm:$0xff] %v223
        %234 = vst [vmem:[%s200 + $0x18] sm:$0xff] %v224
        %235 = vst [vmem:[%s200 + $0x20] sm:$0xff] %v225
        %236 = vst [vmem:[%s200 + $0x28] sm:$0xff] %v226
        %237 = vst [vmem:[%s200 + $0x30] sm:$0xff] %v227
        %238 = vst [vmem:[%s200 + $0x38] sm:$0xff] %v228
        %239 = vst [vmem:[%s200 + $0x40] sm:$0xff] %v229
        %240 = vst [vmem:[%s200 + $0x48] sm:$0xff] %v230
        %s241 = sand.u32 %s96, 1
        %s242 = scalar_lea.sflag [#allocation4], %s241
        %s243 = sand.u32 %s96, 1
        %s244 = smul.addr %s243, 80
        %s245 = scalar_lea.vmem [#allocation7], %s244
        // Predicated region
        $region37: #{tpu_custom_call.1} parent=27 // pred_check
          %p246 = pneg %p106
        $region38: #{tpu_custom_call.1} parent=27 // pred_check_branch
          %248 = sbr.rel (%p246) target = $region40
        $region39: #{tpu_custom_call.1} parent=27 // pred_region
          %s250 = ssub.s32 1280, 1280
          %251 = vsyncadd %s242, %s250
          %s252 = smul.addr %s25, 10
          %s253 = sadd.s32 %s24, %s252
          %s254 = smul.addr %s253, 128
          %s255 = scalar_lea.hbm %s2, %s254
          %s256 = sshll.u32 %s245, 4
          %s257 = int_to_ptr.vmem [resolvable:$true] %s256
          %262 = dma.vmem_to_hbm [thread:$0]  %s257, 1280, %s255, %s242, 128, 128, 8
        $region40: #{tpu_custom_call.1} parent=27 // pred_fallthru
          _
      $region28: #{tpu_custom_call.1} parent=5 // pred_fallthru
        _
      %p263 = scmp.le.s32.totalorder 2, %s15
      // Predicated region
      $region41: #{tpu_custom_call.1} parent=5 // pred_check
        %p264 = pneg %p263
      $region42: #{tpu_custom_call.1} parent=5 // pred_check_branch
        %266 = sbr.rel (%p264) target = $region44
      $region43: #{tpu_custom_call.1} parent=5 // pred_region
        %s267 = ssub.s32 %s15, 2
        // Predicated region
        $region45: #{tpu_custom_call.1} parent=43 // pred_check
          %p268 = pneg %p112
        $region46: #{tpu_custom_call.1} parent=43 // pred_check_branch
          %270 = sbr.rel (%p268) target = $region48
        $region47: #{tpu_custom_call.1} parent=43 // pred_region
          %s271 = sand.u32 %s97, 1
          %s272 = scalar_lea.sflag [#allocation4], %s271
          %s273 = sand.u32 %s97, 1
          %s274 = smul.addr %s273, 80
          %s275 = scalar_lea.vmem [#allocation7], %s274
          %276 = dma.done %s272, 1280
        $region48: #{tpu_custom_call.1} parent=43 // pred_fallthru
          _
      $region44: #{tpu_custom_call.1} parent=5 // pred_fallthru
        _
    $region6: #{tpu_custom_call.1} parent=1 // loop_footer
      %s19 = sadd.s32 1, %s15
    $region7: #{tpu_custom_call.1} parent=1 // loop_footer_branch
      %14 = sbr.rel target = $region3
    $region8: #{tpu_custom_call.1} parent=1 // loop_exit
      _
    %277 = vsyncpa [#allocation3], 1
    %s278 = scalar_lea.sflag [#allocation3], 1
    %279 = vsyncpa %s278, 1
    %280 = vsyncpa [#allocation6], 1
    %281 = vsyncpa [#allocation4], 1
    %s282 = scalar_lea.sflag [#allocation4], 1
    %283 = vsyncpa %s282, 1

</llo_original>
